<compile_context>
chip_gen: v7x
topology: tpu7x:2x2x1
jax: 0.10.0
libtpu: 0.0.40
codegen_flags: <defaults>
</compile_context>

<pallas_src>
import functools
import math

import jax
import jax.numpy as jnp
from jax.experimental import pallas as pl
from jax.experimental.pallas import tpu as pltpu

LOG_STD_MIN = -20.0
LOG_STD_MAX = 2.0


def _round_up(x, m):
    return ((x + m - 1) // m) * m


def _cdiv(a, b):
    return -(-a // b)


def policy_kernel(x_ref, w1_ref, b1_ref, w2_ref, b2_ref, wh_ref, bh_ref,
                  out_ref, *, num_actions):
    # Layer 1: Linear (bf16 MXU inputs, f32 accumulate), bias + ReLU in f32.
    h1 = jnp.dot(x_ref[...], w1_ref[...],
                 preferred_element_type=jnp.float32) + b1_ref[...]
    h1 = jnp.maximum(h1, 0.0)

    # Layer 2: Linear -> ReLU.
    h2 = jnp.dot(h1.astype(w2_ref.dtype), w2_ref[...],
                 preferred_element_type=jnp.float32) + b2_ref[...]
    h2 = jnp.maximum(h2, 0.0)

    # Fused heads: one 128-lane MXU pass. mean in lanes [0:A],
    # log_std in lanes [A:2A], zero in padded lanes.
    heads = jnp.dot(h2.astype(wh_ref.dtype), wh_ref[...],
                    preferred_element_type=jnp.float32) + bh_ref[...]

    # Clamp only the log_std lanes; mean lanes pass through unchanged.
    lane = jax.lax.broadcasted_iota(jnp.int32, heads.shape, 1)
    is_log_std = (lane >= num_actions) & (lane < 2 * num_actions)
    clamped = jnp.clip(heads, LOG_STD_MIN, LOG_STD_MAX)
    out_ref[...] = jnp.where(is_log_std, clamped, heads).astype(out_ref.dtype)


def policy_forward(state, params, num_actions, *,
                   max_block_b=1024, min_split_rows=128):
    """Pallas forward. Returns (mean, log_std), matching PolicyNetwork.forward."""
    (w1, b1, w2, b2, wh, bh) = params
    B, D = state.shape
    H1p = w1.shape[1]
    H2p = w2.shape[1]
    out_lanes = wh.shape[1]

    # bf16 state feed: halves the streaming HBM read; accumulation stays f32.
    state = state.astype(w1.dtype)

    # Batch tile: minimize padding; prefer >= 2 grid steps (shards across both
    # v7x TensorCores) once each step still gets a meaningful number of rows.
    n_steps = _cdiv(B, max_block_b)
    if n_steps == 1 and B >= min_split_rows:
        n_steps = 2
    block_b = _round_up(_cdiv(B, n_steps), 8)
    grid = _cdiv(B, block_b)
    B_pad = grid * block_b
    if B_pad != B:
        state = jnp.pad(state, ((0, B_pad - B), (0, 0)))

    def tiled(shape):      # batch-tiled operand
        return pl.BlockSpec(shape, lambda i: (i, 0))

    def resident(shape):   # VMEM-resident across all grid steps
        return pl.BlockSpec(shape, lambda i: (0, 0))

    kernel = functools.partial(policy_kernel, num_actions=num_actions)

    out = pl.pallas_call(
        kernel,
        out_shape=jax.ShapeDtypeStruct((B_pad, out_lanes), jnp.float32),
        grid_spec=pltpu.PrefetchScalarGridSpec(
            num_scalar_prefetch=0,
            grid=(grid,),
            in_specs=[
                tiled((block_b, D)),
                resident((D, H1p)), resident((1, H1p)),
                resident((H1p, H2p)), resident((1, H2p)),
                resident((H2p, out_lanes)), resident((1, out_lanes)),
            ],
            out_specs=tiled((block_b, out_lanes)),
        ),
        compiler_params=pltpu.CompilerParams(
            dimension_semantics=("parallel",)),
    )(state, w1, b1, w2, b2, wh, bh)

    mean = out[:B, :num_actions]
    log_std = out[:B, num_actions:2 * num_actions]
    return mean, log_std


def init_params(key, num_inputs, num_actions, hidden_dim=(400, 300),
                init_w=0.003, matmul_dtype=jnp.bfloat16):
    """PyTorch-style init; weights stored transposed ([in, out]), lane-padded,
    with the two output heads fused into one 128-lane weight/bias."""
    h1, h2 = hidden_dim
    h1p, h2p = _round_up(h1, 128), _round_up(h2, 128)
    out_lanes = max(_round_up(2 * num_actions, 128), 128)
    keys = jax.random.split(key, 8)

    def uniform(k, shape, bound):
        return jax.random.uniform(k, shape, jnp.float32, -bound, bound)

    # nn.Linear default: U(-1/sqrt(fan_in), 1/sqrt(fan_in)) for both W and b.
    bw1 = 1.0 / math.sqrt(num_inputs)
    w1 = uniform(keys[0], (num_inputs, h1), bw1)
    b1 = uniform(keys[1], (1, h1), bw1)
    bw2 = 1.0 / math.sqrt(h1)
    w2 = uniform(keys[2], (h1, h2), bw2)
    b2 = uniform(keys[3], (1, h2), bw2)
    # mean / log_std heads: U(-init_w, init_w).
    wm = uniform(keys[4], (h2, num_actions), init_w)
    bm = uniform(keys[5], (1, num_actions), init_w)
    ws = uniform(keys[6], (h2, num_actions), init_w)
    bs = uniform(keys[7], (1, num_actions), init_w)

    # Zero lane-padding: padded hidden lanes stay exactly 0 through ReLU and
    # contribute nothing downstream -> forward semantics preserved.
    w1 = jnp.pad(w1, ((0, 0), (0, h1p - h1))).astype(matmul_dtype)
    b1 = jnp.pad(b1, ((0, 0), (0, h1p - h1)))
    w2 = jnp.pad(w2, ((0, h1p - h1), (0, h2p - h2))).astype(matmul_dtype)
    b2 = jnp.pad(b2, ((0, 0), (0, h2p - h2)))

    # Fused heads: single (H2p, 128) weight; mean cols [0:A], log_std cols [A:2A].
    wh = jnp.zeros((h2p, out_lanes), jnp.float32)
    wh = wh.at[:h2, :num_actions].set(wm)
    wh = wh.at[:h2, num_actions:2 * num_actions].set(ws)
    wh = wh.astype(matmul_dtype)
    bh = jnp.zeros((1, out_lanes), jnp.float32)
    bh = bh.at[:, :num_actions].set(bm)
    bh = bh.at[:, num_actions:2 * num_actions].set(bs)

    return (w1, b1, w2, b2, wh, bh)


def policy_reference(state, params, num_actions):
    """Pure-JAX reference (same bf16-weight / f32-accumulate math)."""
    (w1, b1, w2, b2, wh, bh) = params
    x = state.astype(w1.dtype)
    h = jnp.dot(x, w1, preferred_element_type=jnp.float32) + b1
    h = jnp.maximum(h, 0.0)
    h = jnp.dot(h.astype(w2.dtype), w2, preferred_element_type=jnp.float32) + b2
    h = jnp.maximum(h, 0.0)
    heads = jnp.dot(h.astype(wh.dtype), wh, preferred_element_type=jnp.float32) + bh
    mean = heads[:, :num_actions]
    log_std = jnp.clip(heads[:, num_actions:2 * num_actions],
                       LOG_STD_MIN, LOG_STD_MAX)
    return mean, log_std


if __name__ == "__main__":
    num_inputs, num_actions = 28, 4
    batch = 2
    key = jax.random.PRNGKey(0)
    kp, ks = jax.random.split(key)

    params = init_params(kp, num_inputs, num_actions)
    state = jax.random.normal(ks, (batch, num_inputs), jnp.float32)

    mean, log_std = policy_forward(state, params, num_actions)
    mean = jax.block_until_ready(mean)
    log_std = jax.block_until_ready(log_std)

    mean_ref, log_std_ref = policy_reference(state, params, num_actions)
    assert mean.shape == (batch, num_actions), mean.shape
    assert log_std.shape == (batch, num_actions), log_std.shape
    assert jnp.allclose(mean, mean_ref, atol=1e-4, rtol=1e-4), (mean, mean_ref)
    assert jnp.allclose(log_std, log_std_ref, atol=1e-4, rtol=1e-4), (log_std, log_std_ref)
    assert bool(jnp.all(log_std >= LOG_STD_MIN)) and bool(jnp.all(log_std <= LOG_STD_MAX))

    print("KERNEL_OK")
</pallas_src>

<mosaic_0001>
module attributes {stable_mosaic.version = 11 : i64} {
  func.func @policy_kernel(%arg0: i32, %arg1: memref<8x28xbf16, #tpu.memory_space<vmem>>, %arg2: memref<28x512xbf16, #tpu.memory_space<vmem>>, %arg3: memref<1x512xf32, #tpu.memory_space<vmem>>, %arg4: memref<512x384xbf16, #tpu.memory_space<vmem>>, %arg5: memref<1x384xf32, #tpu.memory_space<vmem>>, %arg6: memref<384x128xbf16, #tpu.memory_space<vmem>>, %arg7: memref<1x128xf32, #tpu.memory_space<vmem>>, %arg8: memref<8x128xf32, #tpu.memory_space<vmem>>) attributes {dimension_semantics = [#tpu.dimension_semantics<parallel>], iteration_bounds = array<i64: 1>, scalar_prefetch = 0 : i64, scratch_operands = 0 : i64, tpu.core_type = #tpu.core_type<tc>, window_params = [{transform_indices = @transform_0, window_bounds = array<i64: 8, 28>}, {pipeline_mode = #tpu.pipeline_mode<synchronous>, transform_indices = @transform_1, window_bounds = array<i64: 28, 512>}, {pipeline_mode = #tpu.pipeline_mode<synchronous>, transform_indices = @transform_2, window_bounds = array<i64: 1, 512>}, {pipeline_mode = #tpu.pipeline_mode<synchronous>, transform_indices = @transform_3, window_bounds = array<i64: 512, 384>}, {pipeline_mode = #tpu.pipeline_mode<synchronous>, transform_indices = @transform_4, window_bounds = array<i64: 1, 384>}, {pipeline_mode = #tpu.pipeline_mode<synchronous>, transform_indices = @transform_5, window_bounds = array<i64: 384, 128>}, {pipeline_mode = #tpu.pipeline_mode<synchronous>, transform_indices = @transform_6, window_bounds = array<i64: 1, 128>}, {transform_indices = @transform_7, window_bounds = array<i64: 8, 128>}]} {
    %c0 = arith.constant 0 : index
    %c0_0 = arith.constant 0 : index
    %0 = vector.load %arg1[%c0, %c0_0] : memref<8x28xbf16, #tpu.memory_space<vmem>>, vector<8x28xbf16>
    %c0_1 = arith.constant 0 : index
    %c0_2 = arith.constant 0 : index
    %1 = vector.load %arg2[%c0_1, %c0_2] : memref<28x512xbf16, #tpu.memory_space<vmem>>, vector<28x512xbf16>
    %cst = arith.constant dense<0.000000e+00> : vector<8x512xf32>
    %2 = tpu.matmul %0, %1, %cst {dimension_numbers = #tpu.dot_dimension_numbers<[1], [0], [0], [1], [0, 0, 1, 1], [], []>} : vector<8x28xbf16>, vector<28x512xbf16>, vector<8x512xf32> -> vector<8x512xf32>
    %c0_3 = arith.constant 0 : index
    %c0_4 = arith.constant 0 : index
    %3 = vector.load %arg3[%c0_3, %c0_4] : memref<1x512xf32, #tpu.memory_space<vmem>>, vector<1x512xf32>
    %4 = vector.broadcast %3 : vector<1x512xf32> to vector<8x512xf32>
    %5 = arith.addf %2, %4 : vector<8x512xf32>
    %cst_5 = arith.constant 0.000000e+00 : f32
    %6 = vector.broadcast %cst_5 : f32 to vector<8x512xf32>
    %7 = arith.maximumf %5, %6 : vector<8x512xf32>
    %8 = arith.truncf %7 : vector<8x512xf32> to vector<8x512xbf16>
    %c0_6 = arith.constant 0 : index
    %c0_7 = arith.constant 0 : index
    %9 = vector.load %arg4[%c0_6, %c0_7] : memref<512x384xbf16, #tpu.memory_space<vmem>>, vector<512x384xbf16>
    %cst_8 = arith.constant dense<0.000000e+00> : vector<8x384xf32>
    %10 = tpu.matmul %8, %9, %cst_8 {dimension_numbers = #tpu.dot_dimension_numbers<[1], [0], [0], [1], [0, 0, 1, 1], [], []>} : vector<8x512xbf16>, vector<512x384xbf16>, vector<8x384xf32> -> vector<8x384xf32>
    %c0_9 = arith.constant 0 : index
    %c0_10 = arith.constant 0 : index
    %11 = vector.load %arg5[%c0_9, %c0_10] : memref<1x384xf32, #tpu.memory_space<vmem>>, vector<1x384xf32>
    %12 = vector.broadcast %11 : vector<1x384xf32> to vector<8x384xf32>
    %13 = arith.addf %10, %12 : vector<8x384xf32>
    %cst_11 = arith.constant 0.000000e+00 : f32
    %14 = vector.broadcast %cst_11 : f32 to vector<8x384xf32>
    %15 = arith.maximumf %13, %14 : vector<8x384xf32>
    %16 = arith.truncf %15 : vector<8x384xf32> to vector<8x384xbf16>
    %c0_12 = arith.constant 0 : index
    %c0_13 = arith.constant 0 : index
    %17 = vector.load %arg6[%c0_12, %c0_13] : memref<384x128xbf16, #tpu.memory_space<vmem>>, vector<384x128xbf16>
    %cst_14 = arith.constant dense<0.000000e+00> : vector<8x128xf32>
    %18 = tpu.matmul %16, %17, %cst_14 {dimension_numbers = #tpu.dot_dimension_numbers<[1], [0], [0], [1], [0, 0, 1, 1], [], []>} : vector<8x384xbf16>, vector<384x128xbf16>, vector<8x128xf32> -> vector<8x128xf32>
    %c0_15 = arith.constant 0 : index
    %c0_16 = arith.constant 0 : index
    %19 = vector.load %arg7[%c0_15, %c0_16] : memref<1x128xf32, #tpu.memory_space<vmem>>, vector<1x128xf32>
    %20 = vector.broadcast %19 : vector<1x128xf32> to vector<8x128xf32>
    %21 = arith.addf %18, %20 : vector<8x128xf32>
    %22 = tpu.iota {dimensions = array<i32: 1>} : vector<8x128xi32>
    %c4_i32 = arith.constant 4 : i32
    %23 = vector.broadcast %c4_i32 : i32 to vector<8x128xi32>
    %24 = arith.cmpi sge, %22, %23 : vector<8x128xi32>
    %c8_i32 = arith.constant 8 : i32
    %25 = vector.broadcast %c8_i32 : i32 to vector<8x128xi32>
    %26 = arith.cmpi slt, %22, %25 : vector<8x128xi32>
    %27 = arith.andi %24, %26 : vector<8x128xi1>
    %cst_17 = arith.constant -2.000000e+01 : f32
    %cst_18 = arith.constant 2.000000e+00 : f32
    %28 = vector.broadcast %cst_17 : f32 to vector<8x128xf32>
    %29 = arith.maximumf %28, %21 : vector<8x128xf32>
    %30 = vector.broadcast %cst_18 : f32 to vector<8x128xf32>
    %31 = arith.minimumf %30, %29 : vector<8x128xf32>
    %32 = arith.select %27, %31, %21 : vector<8x128xi1>, vector<8x128xf32>
    %c0_19 = arith.constant 0 : index
    %c0_20 = arith.constant 0 : index
    %33 = vector.load %arg8[%c0_19, %c0_20] : memref<8x128xf32, #tpu.memory_space<vmem>>, vector<8x128xf32>
    tpu.vector_store %arg8[%c0_19, %c0_20], %32 {strides = array<i32>} : memref<8x128xf32, #tpu.memory_space<vmem>>, vector<8x128xf32>,
    return
  }
  func.func @transform_0(%arg0: i32) -> (i32, i32) {
    %c0_i32 = arith.constant 0 : i32
    %c0_i32_0 = arith.constant 0 : i32
    return %arg0, %c0_i32 : i32, i32
  }
  func.func @transform_1(%arg0: i32) -> (i32, i32) {
    %c0_i32 = arith.constant 0 : i32
    %c0_i32_0 = arith.constant 0 : i32
    %c0_i32_1 = arith.constant 0 : i32
    return %c0_i32, %c0_i32_0 : i32, i32
  }
  func.func @transform_2(%arg0: i32) -> (i32, i32) {
    %c0_i32 = arith.constant 0 : i32
    %c0_i32_0 = arith.constant 0 : i32
    %c0_i32_1 = arith.constant 0 : i32
    return %c0_i32, %c0_i32_0 : i32, i32
  }
  func.func @transform_3(%arg0: i32) -> (i32, i32) {
    %c0_i32 = arith.constant 0 : i32
    %c0_i32_0 = arith.constant 0 : i32
    %c0_i32_1 = arith.constant 0 : i32
    return %c0_i32, %c0_i32_0 : i32, i32
  }
  func.func @transform_4(%arg0: i32) -> (i32, i32) {
    %c0_i32 = arith.constant 0 : i32
    %c0_i32_0 = arith.constant 0 : i32
    %c0_i32_1 = arith.constant 0 : i32
    return %c0_i32, %c0_i32_0 : i32, i32
  }
  func.func @transform_5(%arg0: i32) -> (i32, i32) {
    %c0_i32 = arith.constant 0 : i32
    %c0_i32_0 = arith.constant 0 : i32
    %c0_i32_1 = arith.constant 0 : i32
    return %c0_i32, %c0_i32_0 : i32, i32
  }
  func.func @transform_6(%arg0: i32) -> (i32, i32) {
    %c0_i32 = arith.constant 0 : i32
    %c0_i32_0 = arith.constant 0 : i32
    %c0_i32_1 = arith.constant 0 : i32
    return %c0_i32, %c0_i32_0 : i32, i32
  }
  func.func @transform_7(%arg0: i32) -> (i32, i32) {
    %c0_i32 = arith.constant 0 : i32
    %c0_i32_0 = arith.constant 0 : i32
    return %arg0, %c0_i32 : i32, i32
  }
}

</mosaic_0001>

<llo_original>
// kernel: tpu_custom_call.1
$region0: #{tpu_custom_call.1}
  #allocation0 [shape = 'u32[]', space=smem, size = 0x4, offset = 0x4, fixed_abs, tag = 'smem constant byte address 0x4 - core index']
  #allocation1 [shape = 'u32[144,128]{1,0:T(1,128)}', space=vmem, size = 0x12000, scoped, tag = 'internal scratch']
  %s0 = inlined_call_operand.hbm [shape: bf16[8,28], index: 0, kind: input, shape index: {}]
  %s1 = inlined_call_operand.hbm [shape: bf16[28,512], index: 1, kind: input, shape index: {}]
  %s2 = inlined_call_operand.vmem [shape: f32[1,512], index: 2, kind: input, shape index: {}]
  %s3 = inlined_call_operand.hbm [shape: bf16[512,384], index: 3, kind: input, shape index: {}]
  %s4 = inlined_call_operand.vmem [shape: f32[1,384], index: 4, kind: input, shape index: {}]
  %s5 = inlined_call_operand.hbm [shape: bf16[384,128], index: 5, kind: input, shape index: {}]
  %s6 = inlined_call_operand.vmem [shape: f32[1,128], index: 6, kind: input, shape index: {}]
  %s7 = inlined_call_operand.hbm [shape: f32[8,128], index: 7, kind: output, shape index: {}]
  %s8 = sld [smem:[#allocation0]]
  $region54: #{tpu_custom_call.1} parent=0
    _
  %s10 = ssub.s32 1, %s8
  %s11 = scalar_select 0, %s10, %s8
  $region1: #{tpu_custom_call.1} parent=0
    #allocation2 [shape = 'u8[2048]{0}', space=vmem, size = 0x800, scoped, tag = 'input window, operand 0, single buffered']
    #allocation3 [shape = 's32[1]{0}', space=sflag, size = 0x4, scoped, tag = 'scoped memory for tpu_custom_call.1']
    #allocation4 [shape = 's32[1]{0}', space=sflag, size = 0x4, scoped, tag = 'scoped memory for tpu_custom_call.1']
    #allocation5 [shape = 'u8[32768]{0}', space=vmem, size = 0x8000, scoped, tag = 'input window, operand 1, single buffered']
    #allocation6 [shape = 's32[1]{0}', space=sflag, size = 0x4, scoped, tag = 'scoped memory for tpu_custom_call.1']
    #allocation7 [shape = 'u8[393216]{0}', space=vmem, size = 0x60000, scoped, tag = 'input window, operand 3, single buffered']
    #allocation8 [shape = 'u8[98304]{0}', space=vmem, size = 0x18000, scoped, tag = 'input window, operand 5, single buffered']
    #allocation9 [shape = 's32[1]{0}', space=sflag, size = 0x4, scoped, tag = 'scoped memory for tpu_custom_call.1']
    #allocation10 [shape = 'u8[4096]{0}', space=vmem, size = 0x1000, scoped, tag = 'output window, operand 0, single buffered']
    %12 = vsyncpa [#allocation3], 0
    %13 = vsyncpa [#allocation6], 0
    %14 = vsyncpa [#allocation9], 0
    %15 = vsyncpa [#allocation4], 0
    // Predicated region
    $region2: #{tpu_custom_call.1} parent=1 // pred_check
      _
    $region3: #{tpu_custom_call.1} parent=1 // pred_check_branch
      %17 = sbr.rel (0) target = $region5
    $region4: #{tpu_custom_call.1} parent=1 // pred_region
      %s19 = ssub.s32 64, 64
      %20 = vsyncadd [#allocation3], %s19
      %s22 = sshll.u32 [#allocation2], 4
      %s23 = int_to_ptr.vmem [resolvable:$true] %s22
      %25 = dma.hbm_to_vmem [thread:$0]  %s0, 64, %s23, [#allocation3]
    $region5: #{tpu_custom_call.1} parent=1 // pred_fallthru
      _
    // Predicated region
    $region6: #{tpu_custom_call.1} parent=1 // pred_check
      _
    $region7: #{tpu_custom_call.1} parent=1 // pred_check_branch
      %27 = sbr.rel (0) target = $region9
    $region8: #{tpu_custom_call.1} parent=1 // pred_region
      %s29 = ssub.s32 1024, 1024
      %30 = vsyncadd [#allocation6], %s29
      %s31 = sshll.u32 [#allocation5], 4
      %s32 = int_to_ptr.vmem [resolvable:$true] %s31
      %37 = dma.hbm_to_vmem [thread:$0]  %s1, 1024, %s32, [#allocation6], 256, 256, 16
    $region9: #{tpu_custom_call.1} parent=1 // pred_fallthru
      _
    // Predicated region
    $region10: #{tpu_custom_call.1} parent=1 // pred_check
      _
    $region11: #{tpu_custom_call.1} parent=1 // pred_check_branch
      %39 = sbr.rel (0) target = $region13
    $region12: #{tpu_custom_call.1} parent=1 // pred_region
      _
    $region13: #{tpu_custom_call.1} parent=1 // pred_fallthru
      _
    // Predicated region
    $region14: #{tpu_custom_call.1} parent=1 // pred_check
      _
    $region15: #{tpu_custom_call.1} parent=1 // pred_check_branch
      %41 = sbr.rel (0) target = $region17
    $region16: #{tpu_custom_call.1} parent=1 // pred_region
      %s43 = ssub.s32 12288, 12288
      %44 = vsyncadd [#allocation6], %s43
      %s45 = sshll.u32 [#allocation7], 4
      %s46 = int_to_ptr.vmem [resolvable:$true] %s45
      %51 = dma.hbm_to_vmem [thread:$0]  %s3, 12288, %s46, [#allocation6], 192, 192, 12
    $region17: #{tpu_custom_call.1} parent=1 // pred_fallthru
      _
    // Predicated region
    $region18: #{tpu_custom_call.1} parent=1 // pred_check
      _
    $region19: #{tpu_custom_call.1} parent=1 // pred_check_branch
      %53 = sbr.rel (0) target = $region21
    $region20: #{tpu_custom_call.1} parent=1 // pred_region
      _
    $region21: #{tpu_custom_call.1} parent=1 // pred_fallthru
      _
    // Predicated region
    $region22: #{tpu_custom_call.1} parent=1 // pred_check
      _
    $region23: #{tpu_custom_call.1} parent=1 // pred_check_branch
      %55 = sbr.rel (0) target = $region25
    $region24: #{tpu_custom_call.1} parent=1 // pred_region
      %s57 = ssub.s32 3072, 3072
      %58 = vsyncadd [#allocation9], %s57
      %s59 = sshll.u32 [#allocation8], 4
      %s60 = int_to_ptr.vmem [resolvable:$true] %s59
      %65 = dma.hbm_to_vmem [thread:$0]  %s5, 3072, %s60, [#allocation9], 64, 64, 4
    $region25: #{tpu_custom_call.1} parent=1 // pred_fallthru
      _
    // Predicated region
    $region26: #{tpu_custom_call.1} parent=1 // pred_check
      _
    $region27: #{tpu_custom_call.1} parent=1 // pred_check_branch
      %67 = sbr.rel (0) target = $region29
    $region28: #{tpu_custom_call.1} parent=1 // pred_region
      _
    $region29: #{tpu_custom_call.1} parent=1 // pred_fallthru
      _
    // Predicated region
    $region30: #{tpu_custom_call.1} parent=1 // pred_check
      _
    $region31: #{tpu_custom_call.1} parent=1 // pred_check_branch
      %69 = sbr.rel (0) target = $region33
    $region32: #{tpu_custom_call.1} parent=1 // pred_region
      %70 = dma.done [#allocation3], 64
    $region33: #{tpu_custom_call.1} parent=1 // pred_fallthru
      _
    // Predicated region
    $region34: #{tpu_custom_call.1} parent=1 // pred_check
      _
    $region35: #{tpu_custom_call.1} parent=1 // pred_check_branch
      %72 = sbr.rel (0) target = $region37
    $region36: #{tpu_custom_call.1} parent=1 // pred_region
      %73 = dma.done [#allocation6], 1024
    $region37: #{tpu_custom_call.1} parent=1 // pred_fallthru
      _
    // Predicated region
    $region38: #{tpu_custom_call.1} parent=1 // pred_check
      _
    $region39: #{tpu_custom_call.1} parent=1 // pred_check_branch
      %75 = sbr.rel (0) target = $region41
    $region40: #{tpu_custom_call.1} parent=1 // pred_region
      %76 = dma.done [#allocation6], 12288
    $region41: #{tpu_custom_call.1} parent=1 // pred_fallthru
      _
    // Predicated region
    $region42: #{tpu_custom_call.1} parent=1 // pred_check
      _
    $region43: #{tpu_custom_call.1} parent=1 // pred_check_branch
      %78 = sbr.rel (0) target = $region45
    $region44: #{tpu_custom_call.1} parent=1 // pred_region
      %79 = dma.done [#allocation9], 3072
    $region45: #{tpu_custom_call.1} parent=1 // pred_fallthru
      _
    %v81 = vld [vmem:[#allocation2] sm:$0xf]
    %v82 = vld [vmem:[#allocation5] sm:$0xff]
    %v83 = vld [vmem:[#allocation5 + $0x8] sm:$0xff]
    %v84 = vld [vmem:[#allocation5 + $0x10] sm:$0xff]
    %v85 = vld [vmem:[#allocation5 + $0x18] sm:$0xff]
    %v86 = vld [vmem:[#allocation5 + $0x20] sm:$0xff]
    %v87 = vld [vmem:[#allocation5 + $0x28] sm:$0xff]
    %v88 = vld [vmem:[#allocation5 + $0x30] sm:$0x33]
    %v89 = vld [vmem:[#allocation5 + $0x38] sm:$0x33]
    %v90 = vld [vmem:[%s2] sm:$0xf]
    %v92 = vlaneseq
    %v93 = vshrl.u32 %v92, 7
    %v94 = vsub.s32 0, %v93
    %v95 = vrot.slane %v90, %v94
    %v96 = vlaneseq
    %v97 = vshrl.u32 %v96, 7
    %v98 = vsub.s32 1, %v97
    %v99 = vrot.slane %v90, %v98
    %v100 = vlaneseq
    %v101 = vshrl.u32 %v100, 7
    %v102 = vsub.s32 2, %v101
    %v103 = vrot.slane %v90, %v102
    %v104 = vlaneseq
    %v105 = vshrl.u32 %v104, 7
    %v106 = vsub.s32 3, %v105
    %v107 = vrot.slane %v90, %v106
    %v120 = vunpack.c.l.b16 %v82
    %v121 = vunpack.c.h.b16 %v82
    %v122 = vunpack.c.l.b16 %v83
    %v123 = vunpack.c.h.b16 %v83
    %v124 = vunpack.c.l.b16 %v84
    %v125 = vunpack.c.h.b16 %v84
    %v126 = vunpack.c.l.b16 %v85
    %v127 = vunpack.c.h.b16 %v85
    %v128 = vunpack.c.l.b16 %v86
    %v129 = vunpack.c.h.b16 %v86
    %v130 = vunpack.c.l.b16 %v87
    %v131 = vunpack.c.h.b16 %v87
    %v132 = vunpack.c.l.b16 %v88
    %v133 = vunpack.c.h.b16 %v88
    %v134 = vunpack.c.l.b16 %v89
    %v135 = vunpack.c.h.b16 %v89
    %v136 = vpack.c.b16 %v124, %v120
    %v137 = vpack.c.b16 %v125, %v121
    %v138 = vpack.c.b16 %v126, %v122
    %v139 = vpack.c.b16 %v127, %v123
    %v140 = vpack.c.b16 %v132, %v128
    %v141 = vpack.c.b16 %v133, %v129
    %v142 = vpack.c.b16 %v134, %v130
    %v143 = vpack.c.b16 %v135, %v131
    %vm148 = vcmask 228352
    %v150 = vsel %vm148, %v81, 0
    %vm152 = vcmask 1045504
    %v154 = vsel %vm152, %v140, 0
    %v157 = vsel %vm152, %v141, 0
    %v160 = vsel %vm152, %v142, 0
    %v163 = vsel %vm152, %v143, 0
    %165 = vmatprep.subr.bf16.mxu0 %v137
    %166 = vmatpush1.bf16.msra.mxu0 %v136
    %167 = vmatprep.subr.bf16.mxu0 %v157
    %168 = vmatpush1.bf16.msra.mxu0 %v154
    %169 = vmatprep.subr.bf16.mxu0 0
    %170 = vmatpush1.bf16.msra.mxu0 0
    %171 = vmatprep.subr.bf16.mxu0 0
    %172 = vmatpush1.bf16.msra.mxu0 0
    %173 = vmatprep.subr.bf16.mxu0 0
    %174 = vmatpush1.bf16.msra.mxu0 0
    %175 = vmatprep.subr.bf16.mxu0 0
    %176 = vmatpush1.bf16.msra.mxu0 0
    %177 = vmatprep.subr.bf16.mxu0 0
    %178 = vmatpush1.bf16.msra.mxu0 0
    %179 = vmatprep.subr.bf16.mxu0 0
    %180 = vmatpush1.bf16.msra.mxu0 0
    %181 = vmatprep.subr.bf16.mxu0 0
    %182 = vmatpush1.bf16.msra.mxu0 0
    %183 = vmatprep.subr.bf16.mxu0 0
    %184 = vmatpush1.bf16.msra.mxu0 0
    %185 = vmatprep.subr.bf16.mxu0 0
    %186 = vmatpush1.bf16.msra.mxu0 0
    %187 = vmatprep.subr.bf16.mxu0 0
    %188 = vmatpush1.bf16.msra.mxu0 0
    %189 = vmatprep.subr.bf16.mxu0 0
    %190 = vmatpush1.bf16.msra.mxu0 0
    %191 = vmatprep.subr.bf16.mxu0 0
    %192 = vmatpush1.bf16.msra.mxu0 0
    %193 = vmatprep.subr.bf16.mxu0 0
    %194 = vmatpush1.bf16.msra.mxu0 0
    %195 = vmatprep.subr.bf16.mxu0 0
    %196 = vmatpush1.bf16.msra.mxu0 0
    %197 = vmatprep.mubr.bf16.mxu0 0
    %198 = vmatmul.mubr.bf16.gmra.mrb[0].mxu0 %v150
    %v199 = vpop.f32.mrb[0].mxu0
    %v200 = vadd.f32 %v95, %v199
    %v201 = vpop.f32.mrb[0].mxu0
    %v202 = vadd.f32 %v99, %v201
    %v203 = vpop.f32.mrb[0].mxu0
    %v204 = vpop.f32.mrb[0].mxu0
    %205 = vdwg.mxu0
    %206 = vmatprep.subr.bf16.mxu0 %v139
    %207 = vmatpush1.bf16.msra.mxu0 %v138
    %208 = vmatprep.subr.bf16.mxu0 %v163
    %209 = vmatpush1.bf16.msra.mxu0 %v160
    %210 = vmatprep.subr.bf16.mxu0 0
    %211 = vmatpush1.bf16.msra.mxu0 0
    %212 = vmatprep.subr.bf16.mxu0 0
    %213 = vmatpush1.bf16.msra.mxu0 0
    %214 = vmatprep.subr.bf16.mxu0 0
    %215 = vmatpush1.bf16.msra.mxu0 0
    %216 = vmatprep.subr.bf16.mxu0 0
    %217 = vmatpush1.bf16.msra.mxu0 0
    %218 = vmatprep.subr.bf16.mxu0 0
    %219 = vmatpush1.bf16.msra.mxu0 0
    %220 = vmatprep.subr.bf16.mxu0 0
    %221 = vmatpush1.bf16.msra.mxu0 0
    %222 = vmatprep.subr.bf16.mxu0 0
    %223 = vmatpush1.bf16.msra.mxu0 0
    %224 = vmatprep.subr.bf16.mxu0 0
    %225 = vmatpush1.bf16.msra.mxu0 0
    %226 = vmatprep.subr.bf16.mxu0 0
    %227 = vmatpush1.bf16.msra.mxu0 0
    %228 = vmatprep.subr.bf16.mxu0 0
    %229 = vmatpush1.bf16.msra.mxu0 0
    %230 = vmatprep.subr.bf16.mxu0 0
    %231 = vmatpush1.bf16.msra.mxu0 0
    %232 = vmatprep.subr.bf16.mxu0 0
    %233 = vmatpush1.bf16.msra.mxu0 0
    %234 = vmatprep.subr.bf16.mxu0 0
    %235 = vmatpush1.bf16.msra.mxu0 0
    %236 = vmatprep.subr.bf16.mxu0 0
    %237 = vmatpush1.bf16.msra.mxu0 0
    %238 = vmatprep.mubr.bf16.mxu0 0
    %239 = vmatmul.mubr.bf16.gmra.mrb[0].mxu0 %v150
    %v240 = vpop.f32.mrb[0].mxu0
    %v241 = vadd.f32 %v103, %v240
    %v242 = vpop.f32.mrb[0].mxu0
    %v243 = vadd.f32 %v107, %v242
    %v244 = vpop.f32.mrb[0].mxu0
    %v245 = vpop.f32.mrb[0].mxu0
    %246 = vdwg.mxu0
    %v247 = vmax.f32 %v200, 0.0
    %v248 = vmax.f32 %v202, 0.0
    %v249 = vmax.f32 %v241, 0.0
    %v250 = vmax.f32 %v243, 0.0
    %v251 = vpack.c.bf16 %v247, %v247
    %v252 = vpack.c.bf16 %v248, %v248
    %v253 = vpack.c.bf16 %v249, %v249
    %v254 = vpack.c.bf16 %v250, %v250
    %v255 = vld [vmem:[#allocation7] sm:$0xff]
    %v256 = vld [vmem:[#allocation7 + $0x8] sm:$0xf]
    %v257 = vld [vmem:[#allocation7 + $0xc] sm:$0xff]
    %v258 = vld [vmem:[#allocation7 + $0x14] sm:$0xf]
    %v259 = vld [vmem:[#allocation7 + $0x18] sm:$0xff]
    %v260 = vld [vmem:[#allocation7 + $0x20] sm:$0xf]
    %v261 = vld [vmem:[#allocation7 + $0x24] sm:$0xff]
    %v262 = vld [vmem:[#allocation7 + $0x2c] sm:$0xf]
    %v263 = vld [vmem:[#allocation7 + $0x30] sm:$0xff]
    %v264 = vld [vmem:[#allocation7 + $0x38] sm:$0xf]
    %v265 = vld [vmem:[#allocation7 + $0x3c] sm:$0xff]
    %v266 = vld [vmem:[#allocation7 + $0x44] sm:$0xf]
    %v267 = vld [vmem:[#allocation7 + $0x48] sm:$0xff]
    %v268 = vld [vmem:[#allocation7 + $0x50] sm:$0xf]
    %v269 = vld [vmem:[#allocation7 + $0x54] sm:$0xff]
    %v270 = vld [vmem:[#allocation7 + $0x5c] sm:$0xf]
    %v271 = vld [vmem:[#allocation7 + $0x60] sm:$0xff]
    %v272 = vld [vmem:[#allocation7 + $0x68] sm:$0xf]
    %v273 = vld [vmem:[#allocation7 + $0x6c] sm:$0xff]
    %v274 = vld [vmem:[#allocation7 + $0x74] sm:$0xf]
    %v275 = vld [vmem:[#allocation7 + $0x78] sm:$0xff]
    %v276 = vld [vmem:[#allocation7 + $0x80] sm:$0xf]
    %v277 = vld [vmem:[#allocation7 + $0x84] sm:$0xff]
    %v278 = vld [vmem:[#allocation7 + $0x8c] sm:$0xf]
    %v279 = vld [vmem:[#allocation7 + $0x90] sm:$0xff]
    %v280 = vld [vmem:[#allocation7 + $0x98] sm:$0xf]
    %v281 = vld [vmem:[#allocation7 + $0x9c] sm:$0xff]
    %v282 = vld [vmem:[#allocation7 + $0xa4] sm:$0xf]
    %v283 = vld [vmem:[#allocation7 + $0xa8] sm:$0xff]
    %v284 = vld [vmem:[#allocation7 + $0xb0] sm:$0xf]
    %v285 = vld [vmem:[#allocation7 + $0xb4] sm:$0xff]
    %v286 = vld [vmem:[#allocation7 + $0xbc] sm:$0xf]
    %v287 = vld [vmem:[#allocation7 + $0xc0] sm:$0xff]
    %v288 = vld [vmem:[#allocation7 + $0xc8] sm:$0xf]
    %v289 = vld [vmem:[#allocation7 + $0xcc] sm:$0xff]
    %v290 = vld [vmem:[#allocation7 + $0xd4] sm:$0xf]
    %v291 = vld [vmem:[#allocation7 + $0xd8] sm:$0xff]
    %v292 = vld [vmem:[#allocation7 + $0xe0] sm:$0xf]
    %v293 = vld [vmem:[#allocation7 + $0xe4] sm:$0xff]
    %v294 = vld [vmem:[#allocation7 + $0xec] sm:$0xf]
    %v295 = vld [vmem:[#allocation7 + $0xf0] sm:$0xff]
    %v296 = vld [vmem:[#allocation7 + $0xf8] sm:$0xf]
    %v297 = vld [vmem:[#allocation7 + $0xfc] sm:$0xff]
    %v298 = vld [vmem:[#allocation7 + $0x104] sm:$0xf]
    %v299 = vld [vmem:[#allocation7 + $0x108] sm:$0xff]
    %v300 = vld [vmem:[#allocation7 + $0x110] sm:$0xf]
    %v301 = vld [vmem:[#allocation7 + $0x114] sm:$0xff]
    %v302 = vld [vmem:[#allocation7 + $0x11c] sm:$0xf]
    %v303 = vld [vmem:[#allocation7 + $0x120] sm:$0xff]
    %v304 = vld [vmem:[#allocation7 + $0x128] sm:$0xf]
    %v305 = vld [vmem:[#allocation7 + $0x12c] sm:$0xff]
    %v306 = vld [vmem:[#allocation7 + $0x134] sm:$0xf]
    %v307 = vld [vmem:[#allocation7 + $0x138] sm:$0xff]
    %v308 = vld [vmem:[#allocation7 + $0x140] sm:$0xf]
    %v309 = vld [vmem:[#allocation7 + $0x144] sm:$0xff]
    %v310 = vld [vmem:[#allocation7 + $0x14c] sm:$0xf]
    %v311 = vld [vmem:[#allocation7 + $0x150] sm:$0xff]
    %v312 = vld [vmem:[#allocation7 + $0x158] sm:$0xf]
    %v313 = vld [vmem:[#allocation7 + $0x15c] sm:$0xff]
    %v314 = vld [vmem:[#allocation7 + $0x164] sm:$0xf]
    %v315 = vld [vmem:[#allocation7 + $0x168] sm:$0xff]
    %v316 = vld [vmem:[#allocation7 + $0x170] sm:$0xf]
    %v317 = vld [vmem:[#allocation7 + $0x174] sm:$0xff]
    %v318 = vld [vmem:[#allocation7 + $0x17c] sm:$0xf]
    %v319 = vld [vmem:[#allocation7 + $0x180] sm:$0xff]
    %v320 = vld [vmem:[#allocation7 + $0x188] sm:$0xf]
    %v321 = vld [vmem:[#allocation7 + $0x18c] sm:$0xff]
    %v322 = vld [vmem:[#allocation7 + $0x194] sm:$0xf]
    %v323 = vld [vmem:[#allocation7 + $0x198] sm:$0xff]
    %v324 = vld [vmem:[#allocation7 + $0x1a0] sm:$0xf]
    %v325 = vld [vmem:[#allocation7 + $0x1a4] sm:$0xff]
    %v326 = vld [vmem:[#allocation7 + $0x1ac] sm:$0xf]
    %v327 = vld [vmem:[#allocation7 + $0x1b0] sm:$0xff]
    %v328 = vld [vmem:[#allocation7 + $0x1b8] sm:$0xf]
    %v329 = vld [vmem:[#allocation7 + $0x1bc] sm:$0xff]
    %v330 = vld [vmem:[#allocation7 + $0x1c4] sm:$0xf]
    %v331 = vld [vmem:[#allocation7 + $0x1c8] sm:$0xff]
    %v332 = vld [vmem:[#allocation7 + $0x1d0] sm:$0xf]
    %v333 = vld [vmem:[#allocation7 + $0x1d4] sm:$0xff]
    %v334 = vld [vmem:[#allocation7 + $0x1dc] sm:$0xf]
    %v335 = vld [vmem:[#allocation7 + $0x1e0] sm:$0xff]
    %v336 = vld [vmem:[#allocation7 + $0x1e8] sm:$0xf]
    %v337 = vld [vmem:[#allocation7 + $0x1ec] sm:$0xff]
    %v338 = vld [vmem:[#allocation7 + $0x1f4] sm:$0xf]
    %v339 = vld [vmem:[#allocation7 + $0x1f8] sm:$0xff]
    %v340 = vld [vmem:[#allocation7 + $0x200] sm:$0xf]
    %v341 = vld [vmem:[#allocation7 + $0x204] sm:$0xff]
    %v342 = vld [vmem:[#allocation7 + $0x20c] sm:$0xf]
    %v343 = vld [vmem:[#allocation7 + $0x210] sm:$0xff]
    %v344 = vld [vmem:[#allocation7 + $0x218] sm:$0xf]
    %v345 = vld [vmem:[#allocation7 + $0x21c] sm:$0xff]
    %v346 = vld [vmem:[#allocation7 + $0x224] sm:$0xf]
    %v347 = vld [vmem:[#allocation7 + $0x228] sm:$0xff]
    %v348 = vld [vmem:[#allocation7 + $0x230] sm:$0xf]
    %v349 = vld [vmem:[#allocation7 + $0x234] sm:$0xff]
    %v350 = vld [vmem:[#allocation7 + $0x23c] sm:$0xf]
    %v351 = vld [vmem:[#allocation7 + $0x240] sm:$0xff]
    %v352 = vld [vmem:[#allocation7 + $0x248] sm:$0xf]
    %v353 = vld [vmem:[#allocation7 + $0x24c] sm:$0xff]
    %v354 = vld [vmem:[#allocation7 + $0x254] sm:$0xf]
    %v355 = vld [vmem:[#allocation7 + $0x258] sm:$0xff]
    %v356 = vld [vmem:[#allocation7 + $0x260] sm:$0xf]
    %v357 = vld [vmem:[#allocation7 + $0x264] sm:$0xff]
    %v358 = vld [vmem:[#allocation7 + $0x26c] sm:$0xf]
    %v359 = vld [vmem:[#allocation7 + $0x270] sm:$0xff]
    %v360 = vld [vmem:[#allocation7 + $0x278] sm:$0xf]
    %v361 = vld [vmem:[#allocation7 + $0x27c] sm:$0xff]
    %v362 = vld [vmem:[#allocation7 + $0x284] sm:$0xf]
    %v363 = vld [vmem:[#allocation7 + $0x288] sm:$0xff]
    %v364 = vld [vmem:[#allocation7 + $0x290] sm:$0xf]
    %v365 = vld [vmem:[#allocation7 + $0x294] sm:$0xff]
    %v366 = vld [vmem:[#allocation7 + $0x29c] sm:$0xf]
    %v367 = vld [vmem:[#allocation7 + $0x2a0] sm:$0xff]
    %v368 = vld [vmem:[#allocation7 + $0x2a8] sm:$0xf]
    %v369 = vld [vmem:[#allocation7 + $0x2ac] sm:$0xff]
    %v370 = vld [vmem:[#allocation7 + $0x2b4] sm:$0xf]
    %v371 = vld [vmem:[#allocation7 + $0x2b8] sm:$0xff]
    %v372 = vld [vmem:[#allocation7 + $0x2c0] sm:$0xf]
    %v373 = vld [vmem:[#allocation7 + $0x2c4] sm:$0xff]
    %v374 = vld [vmem:[#allocation7 + $0x2cc] sm:$0xf]
    %v375 = vld [vmem:[#allocation7 + $0x2d0] sm:$0xff]
    %v376 = vld [vmem:[#allocation7 + $0x2d8] sm:$0xf]
    %v377 = vld [vmem:[#allocation7 + $0x2dc] sm:$0xff]
    %v378 = vld [vmem:[#allocation7 + $0x2e4] sm:$0xf]
    %v379 = vld [vmem:[#allocation7 + $0x2e8] sm:$0xff]
    %v380 = vld [vmem:[#allocation7 + $0x2f0] sm:$0xf]
    %v381 = vld [vmem:[#allocation7 + $0x2f4] sm:$0xff]
    %v382 = vld [vmem:[#allocation7 + $0x2fc] sm:$0xf]
    %v383 = vld [vmem:[%s4] sm:$0x7]
    %v385 = vlaneseq
    %v386 = vshrl.u32 %v385, 7
    %v387 = vsub.s32 0, %v386
    %v388 = vrot.slane %v383, %v387
    %v389 = vlaneseq
    %v390 = vshrl.u32 %v389, 7
    %v391 = vsub.s32 1, %v390
    %v392 = vrot.slane %v383, %v391
    %v393 = vlaneseq
    %v394 = vshrl.u32 %v393, 7
    %v395 = vsub.s32 2, %v394
    %v396 = vrot.slane %v383, %v395
    %v528 = vunpack.c.l.b16 %v255
    %v529 = vunpack.c.h.b16 %v255
    %v530 = vunpack.c.l.b16 %v256
    %v531 = vunpack.c.l.b16 %v257
    %v532 = vunpack.c.h.b16 %v257
    %v533 = vunpack.c.l.b16 %v258
    %v534 = vunpack.c.l.b16 %v259
    %v535 = vunpack.c.h.b16 %v259
    %v536 = vunpack.c.l.b16 %v260
    %v537 = vunpack.c.l.b16 %v261
    %v538 = vunpack.c.h.b16 %v261
    %v539 = vunpack.c.l.b16 %v262
    %v540 = vunpack.c.l.b16 %v263
    %v541 = vunpack.c.h.b16 %v263
    %v542 = vunpack.c.l.b16 %v264
    %v543 = vunpack.c.l.b16 %v265
    %v544 = vunpack.c.h.b16 %v265
    %v545 = vunpack.c.l.b16 %v266
    %v546 = vunpack.c.l.b16 %v267
    %v547 = vunpack.c.h.b16 %v267
    %v548 = vunpack.c.l.b16 %v268
    %v549 = vunpack.c.l.b16 %v269
    %v550 = vunpack.c.h.b16 %v269
    %v551 = vunpack.c.l.b16 %v270
    %v552 = vunpack.c.l.b16 %v271
    %v553 = vunpack.c.h.b16 %v271
    %v554 = vunpack.c.l.b16 %v272
    %v555 = vunpack.c.l.b16 %v273
    %v556 = vunpack.c.h.b16 %v273
    %v557 = vunpack.c.l.b16 %v274
    %v558 = vunpack.c.l.b16 %v275
    %v559 = vunpack.c.h.b16 %v275
    %v560 = vunpack.c.l.b16 %v276
    %v561 = vunpack.c.l.b16 %v277
    %v562 = vunpack.c.h.b16 %v277
    %v563 = vunpack.c.l.b16 %v278
    %v564 = vunpack.c.l.b16 %v279
    %v565 = vunpack.c.h.b16 %v279
    %v566 = vunpack.c.l.b16 %v280
    %v567 = vunpack.c.l.b16 %v281
    %v568 = vunpack.c.h.b16 %v281
    %v569 = vunpack.c.l.b16 %v282
    %v570 = vunpack.c.l.b16 %v283
    %v571 = vunpack.c.h.b16 %v283
    %v572 = vunpack.c.l.b16 %v284
    %v573 = vunpack.c.l.b16 %v285
    %v574 = vunpack.c.h.b16 %v285
    %v575 = vunpack.c.l.b16 %v286
    %v576 = vunpack.c.l.b16 %v287
    %v577 = vunpack.c.h.b16 %v287
    %v578 = vunpack.c.l.b16 %v288
    %v579 = vunpack.c.l.b16 %v289
    %v580 = vunpack.c.h.b16 %v289
    %v581 = vunpack.c.l.b16 %v290
    %v582 = vunpack.c.l.b16 %v291
    %v583 = vunpack.c.h.b16 %v291
    %v584 = vunpack.c.l.b16 %v292
    %v585 = vunpack.c.l.b16 %v293
    %v586 = vunpack.c.h.b16 %v293
    %v587 = vunpack.c.l.b16 %v294
    %v588 = vunpack.c.l.b16 %v295
    %v589 = vunpack.c.h.b16 %v295
    %v590 = vunpack.c.l.b16 %v296
    %v591 = vunpack.c.l.b16 %v297
    %v592 = vunpack.c.h.b16 %v297
    %v593 = vunpack.c.l.b16 %v298
    %v594 = vunpack.c.l.b16 %v299
    %v595 = vunpack.c.h.b16 %v299
    %v596 = vunpack.c.l.b16 %v300
    %v597 = vunpack.c.l.b16 %v301
    %v598 = vunpack.c.h.b16 %v301
    %v599 = vunpack.c.l.b16 %v302
    %v600 = vunpack.c.l.b16 %v303
    %v601 = vunpack.c.h.b16 %v303
    %v602 = vunpack.c.l.b16 %v304
    %v603 = vunpack.c.l.b16 %v305
    %v604 = vunpack.c.h.b16 %v305
    %v605 = vunpack.c.l.b16 %v306
    %v606 = vunpack.c.l.b16 %v307
    %v607 = vunpack.c.h.b16 %v307
    %v608 = vunpack.c.l.b16 %v308
    %v609 = vunpack.c.l.b16 %v309
    %v610 = vunpack.c.h.b16 %v309
    %v611 = vunpack.c.l.b16 %v310
    %v612 = vunpack.c.l.b16 %v311
    %v613 = vunpack.c.h.b16 %v311
    %v614 = vunpack.c.l.b16 %v312
    %v615 = vunpack.c.l.b16 %v313
    %v616 = vunpack.c.h.b16 %v313
    %v617 = vunpack.c.l.b16 %v314
    %v618 = vunpack.c.l.b16 %v315
    %v619 = vunpack.c.h.b16 %v315
    %v620 = vunpack.c.l.b16 %v316
    %v621 = vunpack.c.l.b16 %v317
    %v622 = vunpack.c.h.b16 %v317
    %v623 = vunpack.c.l.b16 %v318
    %v624 = vunpack.c.l.b16 %v319
    %v625 = vunpack.c.h.b16 %v319
    %v626 = vunpack.c.l.b16 %v320
    %v627 = vunpack.c.l.b16 %v321
    %v628 = vunpack.c.h.b16 %v321
    %v629 = vunpack.c.l.b16 %v322
    %v630 = vunpack.c.l.b16 %v323
    %v631 = vunpack.c.h.b16 %v323
    %v632 = vunpack.c.l.b16 %v324
    %v633 = vunpack.c.l.b16 %v325
    %v634 = vunpack.c.h.b16 %v325
    %v635 = vunpack.c.l.b16 %v326
    %v636 = vunpack.c.l.b16 %v327
    %v637 = vunpack.c.h.b16 %v327
    %v638 = vunpack.c.l.b16 %v328
    %v639 = vunpack.c.l.b16 %v329
    %v640 = vunpack.c.h.b16 %v329
    %v641 = vunpack.c.l.b16 %v330
    %v642 = vunpack.c.l.b16 %v331
    %v643 = vunpack.c.h.b16 %v331
    %v644 = vunpack.c.l.b16 %v332
    %v645 = vunpack.c.l.b16 %v333
    %v646 = vunpack.c.h.b16 %v333
    %v647 = vunpack.c.l.b16 %v334
    %v648 = vunpack.c.l.b16 %v335
    %v649 = vunpack.c.h.b16 %v335
    %v650 = vunpack.c.l.b16 %v336
    %v651 = vunpack.c.l.b16 %v337
    %v652 = vunpack.c.h.b16 %v337
    %v653 = vunpack.c.l.b16 %v338
    %v654 = vunpack.c.l.b16 %v339
    %v655 = vunpack.c.h.b16 %v339
    %v656 = vunpack.c.l.b16 %v340
    %v657 = vunpack.c.l.b16 %v341
    %v658 = vunpack.c.h.b16 %v341
    %v659 = vunpack.c.l.b16 %v342
    %v660 = vunpack.c.l.b16 %v343
    %v661 = vunpack.c.h.b16 %v343
    %v662 = vunpack.c.l.b16 %v344
    %v663 = vunpack.c.l.b16 %v345
    %v664 = vunpack.c.h.b16 %v345
    %v665 = vunpack.c.l.b16 %v346
    %v666 = vunpack.c.l.b16 %v347
    %v667 = vunpack.c.h.b16 %v347
    %v668 = vunpack.c.l.b16 %v348
    %v669 = vunpack.c.l.b16 %v349
    %v670 = vunpack.c.h.b16 %v349
    %v671 = vunpack.c.l.b16 %v350
    %v672 = vunpack.c.l.b16 %v351
    %v673 = vunpack.c.h.b16 %v351
    %v674 = vunpack.c.l.b16 %v352
    %v675 = vunpack.c.l.b16 %v353
    %v676 = vunpack.c.h.b16 %v353
    %v677 = vunpack.c.l.b16 %v354
    %v678 = vunpack.c.l.b16 %v355
    %v679 = vunpack.c.h.b16 %v355
    %v680 = vunpack.c.l.b16 %v356
    %v681 = vunpack.c.l.b16 %v357
    %v682 = vunpack.c.h.b16 %v357
    %v683 = vunpack.c.l.b16 %v358
    %v684 = vunpack.c.l.b16 %v359
    %v685 = vunpack.c.h.b16 %v359
    %v686 = vunpack.c.l.b16 %v360
    %v687 = vunpack.c.l.b16 %v361
    %v688 = vunpack.c.h.b16 %v361
    %v689 = vunpack.c.l.b16 %v362
    %v690 = vunpack.c.l.b16 %v363
    %v691 = vunpack.c.h.b16 %v363
    %v692 = vunpack.c.l.b16 %v364
    %v693 = vunpack.c.l.b16 %v365
    %v694 = vunpack.c.h.b16 %v365
    %v695 = vunpack.c.l.b16 %v366
    %v696 = vunpack.c.l.b16 %v367
    %v697 = vunpack.c.h.b16 %v367
    %v698 = vunpack.c.l.b16 %v368
    %v699 = vunpack.c.l.b16 %v369
    %v700 = vunpack.c.h.b16 %v369
    %v701 = vunpack.c.l.b16 %v370
    %v702 = vunpack.c.l.b16 %v371
    %v703 = vunpack.c.h.b16 %v371
    %v704 = vunpack.c.l.b16 %v372
    %v705 = vunpack.c.l.b16 %v373
    %v706 = vunpack.c.h.b16 %v373
    %v707 = vunpack.c.l.b16 %v374
    %v708 = vunpack.c.l.b16 %v375
    %v709 = vunpack.c.h.b16 %v375
    %v710 = vunpack.c.l.b16 %v376
    %v711 = vunpack.c.l.b16 %v377
    %v712 = vunpack.c.h.b16 %v377
    %v713 = vunpack.c.l.b16 %v378
    %v714 = vunpack.c.l.b16 %v379
    %v715 = vunpack.c.h.b16 %v379
    %v716 = vunpack.c.l.b16 %v380
    %v717 = vunpack.c.l.b16 %v381
    %v718 = vunpack.c.h.b16 %v381
    %v719 = vunpack.c.l.b16 %v382
    %v720 = vpack.c.b16 %v531, %v528
    %v721 = vpack.c.b16 %v532, %v529
    %v722 = vpack.c.b16 %v533, %v530
    %v723 = vpack.c.b16 %v537, %v534
    %v724 = vpack.c.b16 %v538, %v535
    %v725 = vpack.c.b16 %v539, %v536
    %v726 = vpack.c.b16 %v543, %v540
    %v727 = vpack.c.b16 %v544, %v541
    %v728 = vpack.c.b16 %v545, %v542
    %v729 = vpack.c.b16 %v549, %v546
    %v730 = vpack.c.b16 %v550, %v547
    %v731 = vpack.c.b16 %v551, %v548
    %v732 = vpack.c.b16 %v555, %v552
    %v733 = vpack.c.b16 %v556, %v553
    %v734 = vpack.c.b16 %v557, %v554
    %v735 = vpack.c.b16 %v561, %v558
    %v736 = vpack.c.b16 %v562, %v559
    %v737 = vpack.c.b16 %v563, %v560
    %v738 = vpack.c.b16 %v567, %v564
    %v739 = vpack.c.b16 %v568, %v565
    %v740 = vpack.c.b16 %v569, %v566
    %v741 = vpack.c.b16 %v573, %v570
    %v742 = vpack.c.b16 %v574, %v571
    %v743 = vpack.c.b16 %v575, %v572
    %v744 = vpack.c.b16 %v579, %v576
    %v745 = vpack.c.b16 %v580, %v577
    %v746 = vpack.c.b16 %v581, %v578
    %v747 = vpack.c.b16 %v585, %v582
    %v748 = vpack.c.b16 %v586, %v583
    %v749 = vpack.c.b16 %v587, %v584
    %v750 = vpack.c.b16 %v591, %v588
    %v751 = vpack.c.b16 %v592, %v589
    %v752 = vpack.c.b16 %v593, %v590
    %v753 = vpack.c.b16 %v597, %v594
    %v754 = vpack.c.b16 %v598, %v595
    %v755 = vpack.c.b16 %v599, %v596
    %v756 = vpack.c.b16 %v603, %v600
    %v757 = vpack.c.b16 %v604, %v601
    %v758 = vpack.c.b16 %v605, %v602
    %v759 = vpack.c.b16 %v609, %v606
    %v760 = vpack.c.b16 %v610, %v607
    %v761 = vpack.c.b16 %v611, %v608
    %v762 = vpack.c.b16 %v615, %v612
    %v763 = vpack.c.b16 %v616, %v613
    %v764 = vpack.c.b16 %v617, %v614
    %v765 = vpack.c.b16 %v621, %v618
    %v766 = vpack.c.b16 %v622, %v619
    %v767 = vpack.c.b16 %v623, %v620
    %v768 = vpack.c.b16 %v627, %v624
    %v769 = vpack.c.b16 %v628, %v625
    %v770 = vpack.c.b16 %v629, %v626
    %v771 = vpack.c.b16 %v633, %v630
    %v772 = vpack.c.b16 %v634, %v631
    %v773 = vpack.c.b16 %v635, %v632
    %v774 = vpack.c.b16 %v639, %v636
    %v775 = vpack.c.b16 %v640, %v637
    %v776 = vpack.c.b16 %v641, %v638
    %v777 = vpack.c.b16 %v645, %v642
    %v778 = vpack.c.b16 %v646, %v643
    %v779 = vpack.c.b16 %v647, %v644
    %v780 = vpack.c.b16 %v651, %v648
    %v781 = vpack.c.b16 %v652, %v649
    %v782 = vpack.c.b16 %v653, %v650
    %v783 = vpack.c.b16 %v657, %v654
    %v784 = vpack.c.b16 %v658, %v655
    %v785 = vpack.c.b16 %v659, %v656
    %v786 = vpack.c.b16 %v663, %v660
    %v787 = vpack.c.b16 %v664, %v661
    %v788 = vpack.c.b16 %v665, %v662
    %v789 = vpack.c.b16 %v669, %v666
    %v790 = vpack.c.b16 %v670, %v667
    %v791 = vpack.c.b16 %v671, %v668
    %v792 = vpack.c.b16 %v675, %v672
    %v793 = vpack.c.b16 %v676, %v673
    %v794 = vpack.c.b16 %v677, %v674
    %v795 = vpack.c.b16 %v681, %v678
    %v796 = vpack.c.b16 %v682, %v679
    %v797 = vpack.c.b16 %v683, %v680
    %v798 = vpack.c.b16 %v687, %v684
    %v799 = vpack.c.b16 %v688, %v685
    %v800 = vpack.c.b16 %v689, %v686
    %v801 = vpack.c.b16 %v693, %v690
    %v802 = vpack.c.b16 %v694, %v691
    %v803 = vpack.c.b16 %v695, %v692
    %v804 = vpack.c.b16 %v699, %v696
    %v805 = vpack.c.b16 %v700, %v697
    %v806 = vpack.c.b16 %v701, %v698
    %v807 = vpack.c.b16 %v705, %v702
    %v808 = vpack.c.b16 %v706, %v703
    %v809 = vpack.c.b16 %v707, %v704
    %v810 = vpack.c.b16 %v711, %v708
    %v811 = vpack.c.b16 %v712, %v709
    %v812 = vpack.c.b16 %v713, %v710
    %v813 = vpack.c.b16 %v717, %v714
    %v814 = vpack.c.b16 %v718, %v715
    %v815 = vpack.c.b16 %v719, %v716
    %912 = vmatprep.subr.bf16.mxu0 %v721
    %913 = vmatpush1.bf16.msra.mxu0 %v720
    %914 = vmatprep.subr.bf16.mxu0 %v724
    %915 = vmatpush1.bf16.msra.mxu0 %v723
    %916 = vmatprep.subr.bf16.mxu0 %v727
    %917 = vmatpush1.bf16.msra.mxu0 %v726
    %918 = vmatprep.subr.bf16.mxu0 %v730
    %919 = vmatpush1.bf16.msra.mxu0 %v729
    %920 = vmatprep.subr.bf16.mxu0 %v733
    %921 = vmatpush1.bf16.msra.mxu0 %v732
    %922 = vmatprep.subr.bf16.mxu0 %v736
    %923 = vmatpush1.bf16.msra.mxu0 %v735
    %924 = vmatprep.subr.bf16.mxu0 %v739
    %925 = vmatpush1.bf16.msra.mxu0 %v738
    %926 = vmatprep.subr.bf16.mxu0 %v742
    %927 = vmatpush1.bf16.msra.mxu0 %v741
    %928 = vmatprep.subr.bf16.mxu0 %v745
    %929 = vmatpush1.bf16.msra.mxu0 %v744
    %930 = vmatprep.subr.bf16.mxu0 %v748
    %931 = vmatpush1.bf16.msra.mxu0 %v747
    %932 = vmatprep.subr.bf16.mxu0 %v751
    %933 = vmatpush1.bf16.msra.mxu0 %v750
    %934 = vmatprep.subr.bf16.mxu0 %v754
    %935 = vmatpush1.bf16.msra.mxu0 %v753
    %936 = vmatprep.subr.bf16.mxu0 %v757
    %937 = vmatpush1.bf16.msra.mxu0 %v756
    %938 = vmatprep.subr.bf16.mxu0 %v760
    %939 = vmatpush1.bf16.msra.mxu0 %v759
    %940 = vmatprep.subr.bf16.mxu0 %v763
    %941 = vmatpush1.bf16.msra.mxu0 %v762
    %942 = vmatprep.subr.bf16.mxu0 %v766
    %943 = vmatpush1.bf16.msra.mxu0 %v765
    %944 = vmatprep.mubr.bf16.mxu0 %v252
    %945 = vmatmul.mubr.bf16.gmra.mrb[0].mxu0 %v251
    %v946 = vpop.f32.mrb[0].mxu0
    %v947 = vadd.f32 %v388, %v946
    %v948 = vpop.f32.mrb[0].mxu0
    %v949 = vadd.f32 %v392, %v948
    %v950 = vpop.f32.mrb[0].mxu0
    %v951 = vpop.f32.mrb[0].mxu0
    %952 = vdwg.mxu0
    %953 = vmatprep.subr.bf16.mxu0 %v769
    %954 = vmatpush1.bf16.msra.mxu0 %v768
    %955 = vmatprep.subr.bf16.mxu0 %v772
    %956 = vmatpush1.bf16.msra.mxu0 %v771
    %957 = vmatprep.subr.bf16.mxu0 %v775
    %958 = vmatpush1.bf16.msra.mxu0 %v774
    %959 = vmatprep.subr.bf16.mxu0 %v778
    %960 = vmatpush1.bf16.msra.mxu0 %v777
    %961 = vmatprep.subr.bf16.mxu0 %v781
    %962 = vmatpush1.bf16.msra.mxu0 %v780
    %963 = vmatprep.subr.bf16.mxu0 %v784
    %964 = vmatpush1.bf16.msra.mxu0 %v783
    %965 = vmatprep.subr.bf16.mxu0 %v787
    %966 = vmatpush1.bf16.msra.mxu0 %v786
    %967 = vmatprep.subr.bf16.mxu0 %v790
    %968 = vmatpush1.bf16.msra.mxu0 %v789
    %969 = vmatprep.subr.bf16.mxu0 %v793
    %970 = vmatpush1.bf16.msra.mxu0 %v792
    %971 = vmatprep.subr.bf16.mxu0 %v796
    %972 = vmatpush1.bf16.msra.mxu0 %v795
    %973 = vmatprep.subr.bf16.mxu0 %v799
    %974 = vmatpush1.bf16.msra.mxu0 %v798
    %975 = vmatprep.subr.bf16.mxu0 %v802
    %976 = vmatpush1.bf16.msra.mxu0 %v801
    %977 = vmatprep.subr.bf16.mxu0 %v805
    %978 = vmatpush1.bf16.msra.mxu0 %v804
    %979 = vmatprep.subr.bf16.mxu0 %v808
    %980 = vmatpush1.bf16.msra.mxu0 %v807
    %981 = vmatprep.subr.bf16.mxu0 %v811
    %982 = vmatpush1.bf16.msra.mxu0 %v810
    %983 = vmatprep.subr.bf16.mxu0 %v814
    %984 = vmatpush1.bf16.msra.mxu0 %v813
    %985 = vmatprep.mubr.bf16.mxu0 %v254
    %986 = vmatmul.mubr.bf16.gmra.mrb[0].mxu0 %v253
    %v987 = vpop.f32.mrb[0].mxu0
    %v988 = vadd.f32 %v947, %v987
    %v989 = vpop.f32.mrb[0].mxu0
    %v990 = vadd.f32 %v949, %v989
    %v991 = vpop.f32.mrb[0].mxu0
    %v992 = vpop.f32.mrb[0].mxu0
    %993 = vdwg.mxu0
    %994 = vmatprep.subr.bf16.mxu0 0
    %995 = vmatpush1.bf16.msra.mxu0 %v722
    %996 = vmatprep.subr.bf16.mxu0 0
    %997 = vmatpush1.bf16.msra.mxu0 %v725
    %998 = vmatprep.subr.bf16.mxu0 0
    %999 = vmatpush1.bf16.msra.mxu0 %v728
    %1000 = vmatprep.subr.bf16.mxu0 0
    %1001 = vmatpush1.bf16.msra.mxu0 %v731
    %1002 = vmatprep.subr.bf16.mxu0 0
    %1003 = vmatpush1.bf16.msra.mxu0 %v734
    %1004 = vmatprep.subr.bf16.mxu0 0
    %1005 = vmatpush1.bf16.msra.mxu0 %v737
    %1006 = vmatprep.subr.bf16.mxu0 0
    %1007 = vmatpush1.bf16.msra.mxu0 %v740
    %1008 = vmatprep.subr.bf16.mxu0 0
    %1009 = vmatpush1.bf16.msra.mxu0 %v743
    %1010 = vmatprep.subr.bf16.mxu0 0
    %1011 = vmatpush1.bf16.msra.mxu0 %v746
    %1012 = vmatprep.subr.bf16.mxu0 0
    %1013 = vmatpush1.bf16.msra.mxu0 %v749
    %1014 = vmatprep.subr.bf16.mxu0 0
    %1015 = vmatpush1.bf16.msra.mxu0 %v752
    %1016 = vmatprep.subr.bf16.mxu0 0
    %1017 = vmatpush1.bf16.msra.mxu0 %v755
    %1018 = vmatprep.subr.bf16.mxu0 0
    %1019 = vmatpush1.bf16.msra.mxu0 %v758
    %1020 = vmatprep.subr.bf16.mxu0 0
    %1021 = vmatpush1.bf16.msra.mxu0 %v761
    %1022 = vmatprep.subr.bf16.mxu0 0
    %1023 = vmatpush1.bf16.msra.mxu0 %v764
    %1024 = vmatprep.subr.bf16.mxu0 0
    %1025 = vmatpush1.bf16.msra.mxu0 %v767
    %1026 = vmatprep.mubr.bf16.mxu0 %v252
    %1027 = vmatmul.mubr.bf16.gmra.mrb[0].mxu0 %v251
    %v1028 = vpop.f32.mrb[0].mxu0
    %v1029 = vadd.f32 %v396, %v1028
    %v1030 = vpop.f32.mrb[0].mxu0
    %v1031 = vpop.f32.mrb[0].mxu0
    %v1032 = vpop.f32.mrb[0].mxu0
    %1033 = vdwg.mxu0
    %1034 = vmatprep.subr.bf16.mxu0 0
    %1035 = vmatpush1.bf16.msra.mxu0 %v770
    %1036 = vmatprep.subr.bf16.mxu0 0
    %1037 = vmatpush1.bf16.msra.mxu0 %v773
    %1038 = vmatprep.subr.bf16.mxu0 0
    %1039 = vmatpush1.bf16.msra.mxu0 %v776
    %1040 = vmatprep.subr.bf16.mxu0 0
    %1041 = vmatpush1.bf16.msra.mxu0 %v779
    %1042 = vmatprep.subr.bf16.mxu0 0
    %1043 = vmatpush1.bf16.msra.mxu0 %v782
    %1044 = vmatprep.subr.bf16.mxu0 0
    %1045 = vmatpush1.bf16.msra.mxu0 %v785
    %1046 = vmatprep.subr.bf16.mxu0 0
    %1047 = vmatpush1.bf16.msra.mxu0 %v788
    %1048 = vmatprep.subr.bf16.mxu0 0
    %1049 = vmatpush1.bf16.msra.mxu0 %v791
    %1050 = vmatprep.subr.bf16.mxu0 0
    %1051 = vmatpush1.bf16.msra.mxu0 %v794
    %1052 = vmatprep.subr.bf16.mxu0 0
    %1053 = vmatpush1.bf16.msra.mxu0 %v797
    %1054 = vmatprep.subr.bf16.mxu0 0
    %1055 = vmatpush1.bf16.msra.mxu0 %v800
    %1056 = vmatprep.subr.bf16.mxu0 0
    %1057 = vmatpush1.bf16.msra.mxu0 %v803
    %1058 = vmatprep.subr.bf16.mxu0 0
    %1059 = vmatpush1.bf16.msra.mxu0 %v806
    %1060 = vmatprep.subr.bf16.mxu0 0
    %1061 = vmatpush1.bf16.msra.mxu0 %v809
    %1062 = vmatprep.subr.bf16.mxu0 0
    %1063 = vmatpush1.bf16.msra.mxu0 %v812
    %1064 = vmatprep.subr.bf16.mxu0 0
    %1065 = vmatpush1.bf16.msra.mxu0 %v815
    %1066 = vmatprep.mubr.bf16.mxu0 %v254
    %1067 = vmatmul.mubr.bf16.gmra.mrb[0].mxu0 %v253
    %v1068 = vpop.f32.mrb[0].mxu0
    %v1069 = vadd.f32 %v1029, %v1068
    %v1070 = vpop.f32.mrb[0].mxu0
    %v1071 = vpop.f32.mrb[0].mxu0
    %v1072 = vpop.f32.mrb[0].mxu0
    %1073 = vdwg.mxu0
    %v1074 = vmax.f32 %v988, 0.0
    %v1075 = vmax.f32 %v990, 0.0
    %v1076 = vmax.f32 %v1069, 0.0
    %v1077 = vpack.c.bf16 %v1074, %v1074
    %v1078 = vpack.c.bf16 %v1075, %v1075
    %v1079 = vpack.c.bf16 %v1076, %v1076
    %v1080 = vld [vmem:[#allocation8] sm:$0xf]
    %v1081 = vld [vmem:[#allocation8 + $0x4] sm:$0xf]
    %v1082 = vld [vmem:[#allocation8 + $0x8] sm:$0xf]
    %v1083 = vld [vmem:[#allocation8 + $0xc] sm:$0xf]
    %v1084 = vld [vmem:[#allocation8 + $0x10] sm:$0xf]
    %v1085 = vld [vmem:[#allocation8 + $0x14] sm:$0xf]
    %v1086 = vld [vmem:[#allocation8 + $0x18] sm:$0xf]
    %v1087 = vld [vmem:[#allocation8 + $0x1c] sm:$0xf]
    %v1088 = vld [vmem:[#allocation8 + $0x20] sm:$0xf]
    %v1089 = vld [vmem:[#allocation8 + $0x24] sm:$0xf]
    %v1090 = vld [vmem:[#allocation8 + $0x28] sm:$0xf]
    %v1091 = vld [vmem:[#allocation8 + $0x2c] sm:$0xf]
    %v1092 = vld [vmem:[#allocation8 + $0x30] sm:$0xf]
    %v1093 = vld [vmem:[#allocation8 + $0x34] sm:$0xf]
    %v1094 = vld [vmem:[#allocation8 + $0x38] sm:$0xf]
    %v1095 = vld [vmem:[#allocation8 + $0x3c] sm:$0xf]
    %v1096 = vld [vmem:[#allocation8 + $0x40] sm:$0xf]
    %v1097 = vld [vmem:[#allocation8 + $0x44] sm:$0xf]
    %v1098 = vld [vmem:[#allocation8 + $0x48] sm:$0xf]
    %v1099 = vld [vmem:[#allocation8 + $0x4c] sm:$0xf]
    %v1100 = vld [vmem:[#allocation8 + $0x50] sm:$0xf]
    %v1101 = vld [vmem:[#allocation8 + $0x54] sm:$0xf]
    %v1102 = vld [vmem:[#allocation8 + $0x58] sm:$0xf]
    %v1103 = vld [vmem:[#allocation8 + $0x5c] sm:$0xf]
    %v1104 = vld [vmem:[#allocation8 + $0x60] sm:$0xf]
    %v1105 = vld [vmem:[#allocation8 + $0x64] sm:$0xf]
    %v1106 = vld [vmem:[#allocation8 + $0x68] sm:$0xf]
    %v1107 = vld [vmem:[#allocation8 + $0x6c] sm:$0xf]
    %v1108 = vld [vmem:[#allocation8 + $0x70] sm:$0xf]
    %v1109 = vld [vmem:[#allocation8 + $0x74] sm:$0xf]
    %v1110 = vld [vmem:[#allocation8 + $0x78] sm:$0xf]
    %v1111 = vld [vmem:[#allocation8 + $0x7c] sm:$0xf]
    %v1112 = vld [vmem:[#allocation8 + $0x80] sm:$0xf]
    %v1113 = vld [vmem:[#allocation8 + $0x84] sm:$0xf]
    %v1114 = vld [vmem:[#allocation8 + $0x88] sm:$0xf]
    %v1115 = vld [vmem:[#allocation8 + $0x8c] sm:$0xf]
    %v1116 = vld [vmem:[#allocation8 + $0x90] sm:$0xf]
    %v1117 = vld [vmem:[#allocation8 + $0x94] sm:$0xf]
    %v1118 = vld [vmem:[#allocation8 + $0x98] sm:$0xf]
    %v1119 = vld [vmem:[#allocation8 + $0x9c] sm:$0xf]
    %v1120 = vld [vmem:[#allocation8 + $0xa0] sm:$0xf]
    %v1121 = vld [vmem:[#allocation8 + $0xa4] sm:$0xf]
    %v1122 = vld [vmem:[#allocation8 + $0xa8] sm:$0xf]
    %v1123 = vld [vmem:[#allocation8 + $0xac] sm:$0xf]
    %v1124 = vld [vmem:[#allocation8 + $0xb0] sm:$0xf]
    %v1125 = vld [vmem:[#allocation8 + $0xb4] sm:$0xf]
    %v1126 = vld [vmem:[#allocation8 + $0xb8] sm:$0xf]
    %v1127 = vld [vmem:[#allocation8 + $0xbc] sm:$0xf]
    %v1128 = vld [vmem:[%s6] sm:$0x1]
    %v1130 = vlaneseq
    %v1131 = vshrl.u32 %v1130, 7
    %v1132 = vsub.s32 0, %v1131
    %v1133 = vrot.slane %v1128, %v1132
    %v1183 = vunpack.c.l.b16 %v1080
    %v1184 = vunpack.c.l.b16 %v1081
    %v1185 = vunpack.c.l.b16 %v1082
    %v1186 = vunpack.c.l.b16 %v1083
    %v1187 = vunpack.c.l.b16 %v1084
    %v1188 = vunpack.c.l.b16 %v1085
    %v1189 = vunpack.c.l.b16 %v1086
    %v1190 = vunpack.c.l.b16 %v1087
    %v1191 = vunpack.c.l.b16 %v1088
    %v1192 = vunpack.c.l.b16 %v1089
    %v1193 = vunpack.c.l.b16 %v1090
    %v1194 = vunpack.c.l.b16 %v1091
    %v1195 = vunpack.c.l.b16 %v1092
    %v1196 = vunpack.c.l.b16 %v1093
    %v1197 = vunpack.c.l.b16 %v1094
    %v1198 = vunpack.c.l.b16 %v1095
    %v1199 = vunpack.c.l.b16 %v1096
    %v1200 = vunpack.c.l.b16 %v1097
    %v1201 = vunpack.c.l.b16 %v1098
    %v1202 = vunpack.c.l.b16 %v1099
    %v1203 = vunpack.c.l.b16 %v1100
    %v1204 = vunpack.c.l.b16 %v1101
    %v1205 = vunpack.c.l.b16 %v1102
    %v1206 = vunpack.c.l.b16 %v1103
    %v1207 = vunpack.c.l.b16 %v1104
    %v1208 = vunpack.c.l.b16 %v1105
    %v1209 = vunpack.c.l.b16 %v1106
    %v1210 = vunpack.c.l.b16 %v1107
    %v1211 = vunpack.c.l.b16 %v1108
    %v1212 = vunpack.c.l.b16 %v1109
    %v1213 = vunpack.c.l.b16 %v1110
    %v1214 = vunpack.c.l.b16 %v1111
    %v1215 = vunpack.c.l.b16 %v1112
    %v1216 = vunpack.c.l.b16 %v1113
    %v1217 = vunpack.c.l.b16 %v1114
    %v1218 = vunpack.c.l.b16 %v1115
    %v1219 = vunpack.c.l.b16 %v1116
    %v1220 = vunpack.c.l.b16 %v1117
    %v1221 = vunpack.c.l.b16 %v1118
    %v1222 = vunpack.c.l.b16 %v1119
    %v1223 = vunpack.c.l.b16 %v1120
    %v1224 = vunpack.c.l.b16 %v1121
    %v1225 = vunpack.c.l.b16 %v1122
    %v1226 = vunpack.c.l.b16 %v1123
    %v1227 = vunpack.c.l.b16 %v1124
    %v1228 = vunpack.c.l.b16 %v1125
    %v1229 = vunpack.c.l.b16 %v1126
    %v1230 = vunpack.c.l.b16 %v1127
    %v1231 = vpack.c.b16 %v1184, %v1183
    %v1232 = vpack.c.b16 %v1186, %v1185
    %v1233 = vpack.c.b16 %v1188, %v1187
    %v1234 = vpack.c.b16 %v1190, %v1189
    %v1235 = vpack.c.b16 %v1192, %v1191
    %v1236 = vpack.c.b16 %v1194, %v1193
    %v1237 = vpack.c.b16 %v1196, %v1195
    %v1238 = vpack.c.b16 %v1198, %v1197
    %v1239 = vpack.c.b16 %v1200, %v1199
    %v1240 = vpack.c.b16 %v1202, %v1201
    %v1241 = vpack.c.b16 %v1204, %v1203
    %v1242 = vpack.c.b16 %v1206, %v1205
    %v1243 = vpack.c.b16 %v1208, %v1207
    %v1244 = vpack.c.b16 %v1210, %v1209
    %v1245 = vpack.c.b16 %v1212, %v1211
    %v1246 = vpack.c.b16 %v1214, %v1213
    %v1247 = vpack.c.b16 %v1216, %v1215
    %v1248 = vpack.c.b16 %v1218, %v1217
    %v1249 = vpack.c.b16 %v1220, %v1219
    %v1250 = vpack.c.b16 %v1222, %v1221
    %v1251 = vpack.c.b16 %v1224, %v1223
    %v1252 = vpack.c.b16 %v1226, %v1225
    %v1253 = vpack.c.b16 %v1228, %v1227
    %v1254 = vpack.c.b16 %v1230, %v1229
    %1279 = vmatprep.subr.bf16.mxu0 0
    %1280 = vmatpush1.bf16.msra.mxu0 %v1231
    %1281 = vmatprep.subr.bf16.mxu0 0
    %1282 = vmatpush1.bf16.msra.mxu0 %v1232
    %1283 = vmatprep.subr.bf16.mxu0 0
    %1284 = vmatpush1.bf16.msra.mxu0 %v1233
    %1285 = vmatprep.subr.bf16.mxu0 0
    %1286 = vmatpush1.bf16.msra.mxu0 %v1234
    %1287 = vmatprep.subr.bf16.mxu0 0
    %1288 = vmatpush1.bf16.msra.mxu0 %v1235
    %1289 = vmatprep.subr.bf16.mxu0 0
    %1290 = vmatpush1.bf16.msra.mxu0 %v1236
    %1291 = vmatprep.subr.bf16.mxu0 0
    %1292 = vmatpush1.bf16.msra.mxu0 %v1237
    %1293 = vmatprep.subr.bf16.mxu0 0
    %1294 = vmatpush1.bf16.msra.mxu0 %v1238
    %1295 = vmatprep.subr.bf16.mxu0 0
    %1296 = vmatpush1.bf16.msra.mxu0 %v1239
    %1297 = vmatprep.subr.bf16.mxu0 0
    %1298 = vmatpush1.bf16.msra.mxu0 %v1240
    %1299 = vmatprep.subr.bf16.mxu0 0
    %1300 = vmatpush1.bf16.msra.mxu0 %v1241
    %1301 = vmatprep.subr.bf16.mxu0 0
    %1302 = vmatpush1.bf16.msra.mxu0 %v1242
    %1303 = vmatprep.subr.bf16.mxu0 0
    %1304 = vmatpush1.bf16.msra.mxu0 %v1243
    %1305 = vmatprep.subr.bf16.mxu0 0
    %1306 = vmatpush1.bf16.msra.mxu0 %v1244
    %1307 = vmatprep.subr.bf16.mxu0 0
    %1308 = vmatpush1.bf16.msra.mxu0 %v1245
    %1309 = vmatprep.subr.bf16.mxu0 0
    %1310 = vmatpush1.bf16.msra.mxu0 %v1246
    %1311 = vmatprep.mubr.bf16.mxu0 %v1078
    %1312 = vmatmul.mubr.bf16.gmra.mrb[0].mxu0 %v1077
    %v1313 = vpop.f32.mrb[0].mxu0
    %v1314 = vadd.f32 %v1133, %v1313
    %v1315 = vpop.f32.mrb[0].mxu0
    %v1316 = vpop.f32.mrb[0].mxu0
    %v1317 = vpop.f32.mrb[0].mxu0
    %1318 = vdwg.mxu0
    %1319 = vmatprep.subr.bf16.mxu0 0
    %1320 = vmatpush1.bf16.msra.mxu0 %v1247
    %1321 = vmatprep.subr.bf16.mxu0 0
    %1322 = vmatpush1.bf16.msra.mxu0 %v1248
    %1323 = vmatprep.subr.bf16.mxu0 0
    %1324 = vmatpush1.bf16.msra.mxu0 %v1249
    %1325 = vmatprep.subr.bf16.mxu0 0
    %1326 = vmatpush1.bf16.msra.mxu0 %v1250
    %1327 = vmatprep.subr.bf16.mxu0 0
    %1328 = vmatpush1.bf16.msra.mxu0 %v1251
    %1329 = vmatprep.subr.bf16.mxu0 0
    %1330 = vmatpush1.bf16.msra.mxu0 %v1252
    %1331 = vmatprep.subr.bf16.mxu0 0
    %1332 = vmatpush1.bf16.msra.mxu0 %v1253
    %1333 = vmatprep.subr.bf16.mxu0 0
    %1334 = vmatpush1.bf16.msra.mxu0 %v1254
    %1335 = vmatprep.subr.bf16.mxu0 0
    %1336 = vmatpush1.bf16.msra.mxu0 0
    %1337 = vmatprep.subr.bf16.mxu0 0
    %1338 = vmatpush1.bf16.msra.mxu0 0
    %1339 = vmatprep.subr.bf16.mxu0 0
    %1340 = vmatpush1.bf16.msra.mxu0 0
    %1341 = vmatprep.subr.bf16.mxu0 0
    %1342 = vmatpush1.bf16.msra.mxu0 0
    %1343 = vmatprep.subr.bf16.mxu0 0
    %1344 = vmatpush1.bf16.msra.mxu0 0
    %1345 = vmatprep.subr.bf16.mxu0 0
    %1346 = vmatpush1.bf16.msra.mxu0 0
    %1347 = vmatprep.subr.bf16.mxu0 0
    %1348 = vmatpush1.bf16.msra.mxu0 0
    %1349 = vmatprep.subr.bf16.mxu0 0
    %1350 = vmatpush1.bf16.msra.mxu0 0
    %1351 = vmatprep.mubr.bf16.mxu0 0
    %1352 = vmatmul.mubr.bf16.gmra.mrb[0].mxu0 %v1079
    %v1353 = vpop.f32.mrb[0].mxu0
    %v1354 = vadd.f32 %v1314, %v1353
    %v1355 = vpop.f32.mrb[0].mxu0
    %v1356 = vpop.f32.mrb[0].mxu0
    %v1357 = vpop.f32.mrb[0].mxu0
    %1358 = vdwg.mxu0
    %v1359 = vlaneseq
    %v1360 = vand.u32 %v1359, 127
    %vm1361 = vcmp.ge.s32.totalorder %v1360, 4
    %vm1362 = vcmp.lt.s32.totalorder %v1360, 8
    %vm1363 = vmand %vm1361, %vm1362
    %v1364 = vmax.f32 %v1354, -20.0
    %v1365 = vmin.f32 %v1364, 2.0
    %v1366 = vsel %vm1363, %v1365, %v1354
    %1367 = vst [vmem:[#allocation10] sm:$0xff] %v1366
    // Predicated region
    $region46: #{tpu_custom_call.1} parent=1 // pred_check
      _
    $region47: #{tpu_custom_call.1} parent=1 // pred_check_branch
      %1369 = sbr.rel (0) target = $region49
    $region48: #{tpu_custom_call.1} parent=1 // pred_region
      %s1371 = ssub.s32 128, 128
      %1372 = vsyncadd [#allocation4], %s1371
      %s1374 = sshll.u32 [#allocation10], 4
      %s1375 = int_to_ptr.vmem [resolvable:$true] %s1374
      %1377 = dma.vmem_to_hbm [thread:$0]  %s1375, 128, %s7, [#allocation4]
    $region49: #{tpu_custom_call.1} parent=1 // pred_fallthru
      _
    // Predicated region
    $region50: #{tpu_custom_call.1} parent=1 // pred_check
      _
    $region51: #{tpu_custom_call.1} parent=1 // pred_check_branch
      %1379 = sbr.rel (0) target = $region53
    $region52: #{tpu_custom_call.1} parent=1 // pred_region
      %1380 = dma.done [#allocation4], 128
    $region53: #{tpu_custom_call.1} parent=1 // pred_fallthru
      _
    %1381 = vsyncpa [#allocation3], 1
    %1382 = vsyncpa [#allocation6], 1
    %1383 = vsyncpa [#allocation9], 1
    %1384 = vsyncpa [#allocation4], 1

</llo_original>
